<compile_context>
chip_gen: v7x
topology: tpu7x:2x2x1
jax: 0.10.0
libtpu: 0.0.40
codegen_flags: <defaults>
</compile_context>

<pallas_src>
import functools

import jax
import jax.numpy as jnp
from jax.experimental import pallas as pl
from jax.experimental.pallas import tpu as pltpu

_NEG = -1e30  # finite "-inf": padded lanes never produce NaN via inf - inf


# ---------------------------------------------------------------------------
# Kernels
# ---------------------------------------------------------------------------
def _mcloss_kernel_single(feat_ref, mask_ref, out_ref, *, inv_hw):
    """Whole spatial extent resident: one bn-image block per grid step.

    feat_ref : (bn, G, P, HW)   native dtype
    mask_ref : (1,  G, P, 1)    resident (constant index_map)
    out_ref  : (bn, 1, 2*G)     [..., :G] = logits, [..., G:] = softmax sums
    """
    x = feat_ref[...].astype(jnp.float32)      # f32 math (no bf16 VPU/EUP on v5e)
    msk = mask_ref[...].astype(jnp.float32)

    # --- masked / logits branch FIRST so its full-size temp (x*msk) is dead
    #     before the softmax temporaries are created (bounds the live set).
    gmax_xm = jnp.max(x * msk, axis=2)                     # (bn, G, HW)
    logits = jnp.sum(gmax_xm, axis=-1) * inv_hw            # (bn, G)

    # --- softmax branch.  Exact per-channel logsumexp c = m + log(l); then
    #     max_p softmax(x)[p, s] == exp(max_p (x[p, s] - c[p]))   (exp monotone)
    #     -> no full normalized tensor, no approximate reciprocal.
    m = jnp.max(x, axis=-1, keepdims=True)                 # (bn, G, P, 1)
    l = jnp.sum(jnp.exp(x - m), axis=-1, keepdims=True)    # (bn, G, P, 1)
    c = m + jnp.log(l)
    gmax_sm = jnp.exp(jnp.max(x - c, axis=2))              # (bn, G, HW)
    smsum = jnp.sum(gmax_sm, axis=-1)                      # (bn, G)

    fused = jnp.concatenate([logits, smsum], axis=-1)      # (bn, 2*G), one store
    out_ref[...] = fused[:, None, :].astype(out_ref.dtype)


def _mcloss_kernel_tiled(feat_ref, mask_ref, out_ref, m_sc, l_sc, axm_sc, asm_sc,
                         *, inv_hw, hw_real, thw):
    """HW-tiled two-pass (online-softmax) variant for large feature maps.

    grid = (batch, pass, hw_tile).  Pass 0: masked/logits accumulation plus
    per-channel running (max, sum-exp).  Pass 1: re-stream the tiles and
    accumulate sum_s exp(max_p (x - lse_p)).  Costs one extra HBM read of the
    feature tensor but bounds VMEM residency to a single (G, P, thw) tile.
    """
    p = pl.program_id(1)
    t = pl.program_id(2)
    nt = pl.num_programs(2)

    x = feat_ref[...].astype(jnp.float32)                  # (1, G, P, thw)
    lane = jax.lax.broadcasted_iota(jnp.int32, (1, 1, 1, thw), 3)
    valid = (t * thw + lane) < hw_real                     # mask padded HW lanes
    xs = jnp.where(valid, x, _NEG)

    @pl.when(jnp.logical_and(p == 0, t == 0))
    def _():
        m_sc[...] = jnp.full(m_sc.shape, _NEG, jnp.float32)
        l_sc[...] = jnp.zeros(l_sc.shape, jnp.float32)
        axm_sc[...] = jnp.zeros(axm_sc.shape, jnp.float32)

    @pl.when(p == 0)
    def _():
        # Masked / logits branch (single pass).  Padded spatial lanes hold 0,
        # so their per-group max is 0 and contributes nothing to the sum.
        msk = mask_ref[...].astype(jnp.float32)
        axm_sc[...] += jnp.sum(jnp.max(x * msk, axis=2), axis=-1)
        # Online softmax statistics: running max + rescaled running sum-exp.
        tmax = jnp.max(xs, axis=-1, keepdims=True)          # (1, G, P, 1)
        m_new = jnp.maximum(m_sc[...], tmax)
        l_sc[...] = (l_sc[...] * jnp.exp(m_sc[...] - m_new)
                     + jnp.sum(jnp.exp(xs - m_new), axis=-1, keepdims=True))
        m_sc[...] = m_new

    @pl.when(p == 1)
    def _():
        @pl.when(t == 0)
        def _():
            asm_sc[...] = jnp.zeros(asm_sc.shape, jnp.float32)

        c = m_sc[...] + jnp.log(l_sc[...])                   # per-channel lse
        asm_sc[...] += jnp.sum(jnp.exp(jnp.max(xs - c, axis=2)), axis=-1)

        @pl.when(t == nt - 1)
        def _():
            fused = jnp.concatenate([axm_sc[...] * inv_hw, asm_sc[...]], axis=-1)
            out_ref[...] = fused[:, None, :].astype(out_ref.dtype)


# ---------------------------------------------------------------------------
# Sizing helpers
# ---------------------------------------------------------------------------
def _round_up(x, m):
    return (x + m - 1) // m * m


def _vmem_params():
    """Per-generation (per-step working-set budget, vmem_limit_bytes)."""
    vmem_cap = 64 * 1024 * 1024                  # conservative default (v7x per-TC)
    try:
        cap = getattr(pltpu.get_tpu_info(), "vmem_capacity_bytes", None)
        if cap:
            vmem_cap = int(cap)
    except Exception:
        pass
    if vmem_cap >= 96 * 1024 * 1024:             # v5e / v6e: 128 MiB physical VMEM
        return 20 * 1024 * 1024, 96 * 1024 * 1024
    # v7x: 64 MiB per TensorCore -- keep the scoped limit and working set small.
    return 6 * 1024 * 1024, 32 * 1024 * 1024


def _pick_batch_block(n, num_classes, per_class, hw, budget):
    """Images per grid step for the single-pass path.

    The estimate counts the 2x-buffered input block (conservatively at f32
    width) PLUS ~3 simultaneously-live full-size f32 temporaries, all with the
    sublane (P->8) and lane (HW->128) padding Mosaic actually allocates.
    Returns 0 if even one image does not fit -> caller falls back to HW tiling.
    """
    fp32_img = num_classes * _round_up(per_class, 8) * _round_up(hw, 128) * 4
    per_img = 5 * fp32_img                       # 2x input buffers + ~3x f32 temps
    if per_img > budget:
        return 0
    bn = min(budget // per_img, n)
    if n >= 2:
        # Keep >= 2 grid steps so the "parallel" batch axis can be sharded
        # across v7x's two TensorCores (negligible cost on v5e/v6e).
        bn = min(bn, _round_up(n, 2) // 2)
    if bn >= 8:
        bn = (bn // 8) * 8                       # round DOWN only -- never exceed budget
    return max(int(bn), 1)


# ---------------------------------------------------------------------------
# Wrapper
# ---------------------------------------------------------------------------
def gen_mask(key, num_classes, per_class, p):
    """Deterministic analogue of SimpleMCLoss._gen_mask (drop channels per group)."""
    drop_num = int(per_class * p)
    mask = jnp.ones((num_classes * per_class,), jnp.float32)
    for j in range(num_classes):
        kj = jax.random.fold_in(key, j)
        drop = jax.random.choice(kj, per_class, shape=(drop_num,),
                                 replace=False) + j * per_class
        mask = mask.at[drop].set(0.0)
    return mask


def simple_mc_loss(feat, targets, mask, *, num_classes, per_class,
                   alpha=1.5, beta=20.0, bn=None, force_tiled=False, hw_tile=None):
    n, c, h, w = feat.shape
    assert c == num_classes * per_class
    G, P, hw = num_classes, per_class, h * w

    # Free metadata reshapes; no wrapper-side dtype materialization of feat.
    feat4 = feat.reshape(n, G, P, hw)
    mask4 = mask.reshape(1, G, P, 1).astype(jnp.float32)

    budget, vmem_limit = _vmem_params()

    use_tiled = force_tiled
    if not use_tiled:
        if bn is None:
            bn = _pick_batch_block(n, G, P, hw, budget)
        use_tiled = bn < 1

    if not use_tiled:
        n_pad = _round_up(n, bn)
        if n_pad != n:
            feat4 = jnp.pad(feat4, ((0, n_pad - n), (0, 0), (0, 0), (0, 0)))
        out = pl.pallas_call(
            functools.partial(_mcloss_kernel_single, inv_hw=1.0 / hw),
            out_shape=jax.ShapeDtypeStruct((n_pad, 1, 2 * G), jnp.float32),
            grid_spec=pltpu.PrefetchScalarGridSpec(
                num_scalar_prefetch=0,
                grid=(n_pad // bn,),
                in_specs=[
                    # feat: (bn, G, P, HW); minor dims equal the full array dims.
                    # TODO(synk): on v5e/v6e consider pipeline_mode=pl.Buffered(3)
                    # if a trace shows exposed DMA between steps (VMEM to spare).
                    pl.BlockSpec((bn, G, P, hw), lambda b: (b, 0, 0, 0)),
                    # mask: constant block index -> fetched once, stays resident.
                    pl.BlockSpec((1, G, P, 1), lambda b: (0, 0, 0, 0)),
                ],
                out_specs=pl.BlockSpec((bn, 1, 2 * G), lambda b: (b, 0, 0)),
            ),
            compiler_params=pltpu.CompilerParams(
                dimension_semantics=("parallel",),
                vmem_limit_bytes=vmem_limit),
        )(feat4, mask4)
    else:
        if hw_tile is None:
            # Largest 128-multiple HW tile whose (2 buf + ~3 temp) f32 working
            # set fits the budget (one image per block in this path).
            per_col = G * _round_up(P, 8) * 4 * 5
            hw_tile = max(128, budget // per_col // 128 * 128)
            hw_tile = min(hw_tile, _round_up(hw, 128))
        thw = int(hw_tile)
        hw_pad = _round_up(hw, thw)
        if hw_pad != hw:
            feat4 = jnp.pad(feat4, ((0, 0), (0, 0), (0, 0), (0, hw_pad - hw)))
        out = pl.pallas_call(
            functools.partial(_mcloss_kernel_tiled, inv_hw=1.0 / hw,
                              hw_real=hw, thw=thw),
            out_shape=jax.ShapeDtypeStruct((n, 1, 2 * G), jnp.float32),
            grid_spec=pltpu.PrefetchScalarGridSpec(
                num_scalar_prefetch=0,
                grid=(n, 2, hw_pad // thw),
                in_specs=[
                    pl.BlockSpec((1, G, P, thw), lambda b, p, t: (b, 0, 0, t)),
                    pl.BlockSpec((1, G, P, 1), lambda b, p, t: (0, 0, 0, 0)),
                ],
                out_specs=pl.BlockSpec((1, 1, 2 * G), lambda b, p, t: (b, 0, 0)),
                scratch_shapes=[
                    pltpu.VMEM((1, G, P, 1), jnp.float32),   # running max
                    pltpu.VMEM((1, G, P, 1), jnp.float32),   # running sum-exp
                    pltpu.VMEM((1, G), jnp.float32),         # masked-branch acc
                    pltpu.VMEM((1, G), jnp.float32),         # softmax-branch acc
                ]),
            compiler_params=pltpu.CompilerParams(
                dimension_semantics=("parallel", "arbitrary", "arbitrary"),
                vmem_limit_bytes=vmem_limit),
        )(feat4, mask4)

    out = out[:n, 0, :]
    logits = out[:, :G]
    smsum = out[:, G:]

    # L_dis: cross-entropy on the tiny (n, G) logits -- plain JAX glue.
    logz = jax.scipy.special.logsumexp(logits, axis=-1)
    picked = jnp.take_along_axis(logits, targets[:, None], axis=-1)[:, 0]
    l_dis = jnp.mean(logz - picked)

    # L_div = 1 - mean over (n, G) of spatial sums of group-maxed softmax / P.
    l_div = 1.0 - jnp.mean(smsum) / per_class

    return alpha * l_dis + beta * l_div


def reference_loss(feat, targets, mask, *, num_classes, per_class,
                   alpha=1.5, beta=20.0):
    """Pure-JAX reference mirroring the PyTorch forward."""
    n, c, h, w = feat.shape
    hw = h * w
    f3 = feat.reshape(n, c, hw).astype(jnp.float32)
    sm = jax.nn.softmax(f3, axis=2)
    pooled = sm.reshape(n, num_classes, per_class, hw).max(axis=2)
    l_div = 1.0 - pooled.sum(axis=2).mean() / per_class
    xm = mask.reshape(1, c, 1).astype(jnp.float32) * f3
    gm = xm.reshape(n, num_classes, per_class, hw).max(axis=2)
    logits = gm.mean(axis=2)
    logz = jax.scipy.special.logsumexp(logits, axis=-1)
    picked = jnp.take_along_axis(logits, targets[:, None], axis=-1)[:, 0]
    l_dis = jnp.mean(logz - picked)
    return alpha * l_dis + beta * l_div


if __name__ == "__main__":
    num_classes, per_class, p = 4, 3, 0.4
    alpha, beta = 1.5, 20.0
    c = num_classes * per_class

    key = jax.random.PRNGKey(0)
    k_feat, k_tgt, k_mask, k_feat2, k_tgt2 = jax.random.split(key, 5)
    mask = gen_mask(k_mask, num_classes, per_class, p)

    # --- Test 1: single-pass path; n not a multiple of bn (exercises batch pad).
    n1, h1, w1 = 3, 16, 16
    feat1 = jax.random.normal(k_feat, (n1, c, h1, w1), dtype=jnp.float32)
    tgt1 = jax.random.randint(k_tgt, (n1,), 0, num_classes, dtype=jnp.int32)
    loss1 = jax.block_until_ready(simple_mc_loss(
        feat1, tgt1, mask, num_classes=num_classes, per_class=per_class,
        alpha=alpha, beta=beta))
    ref1 = jax.block_until_ready(reference_loss(
        feat1, tgt1, mask, num_classes=num_classes, per_class=per_class,
        alpha=alpha, beta=beta))
    assert jnp.allclose(loss1, ref1, rtol=1e-3, atol=1e-3), (loss1, ref1)

    # --- Test 2: same path, bf16 input streamed in native dtype.
    loss2 = jax.block_until_ready(simple_mc_loss(
        feat1.astype(jnp.bfloat16), tgt1, mask, num_classes=num_classes,
        per_class=per_class, alpha=alpha, beta=beta))
    ref2 = jax.block_until_ready(reference_loss(
        feat1.astype(jnp.bfloat16), tgt1, mask, num_classes=num_classes,
        per_class=per_class, alpha=alpha, beta=beta))
    assert jnp.allclose(loss2, ref2, rtol=2e-3, atol=2e-3), (loss2, ref2)

    # --- Test 3: HW-tiled online-softmax path with a partial last HW tile.
    n3, h3, w3 = 2, 12, 12                       # hw = 144 -> 2 tiles of 128
    feat3 = jax.random.normal(k_feat2, (n3, c, h3, w3), dtype=jnp.float32)
    tgt3 = jax.random.randint(k_tgt2, (n3,), 0, num_classes, dtype=jnp.int32)
    loss3 = jax.block_until_ready(simple_mc_loss(
        feat3, tgt3, mask, num_classes=num_classes, per_class=per_class,
        alpha=alpha, beta=beta, force_tiled=True, hw_tile=128))
    ref3 = jax.block_until_ready(reference_loss(
        feat3, tgt3, mask, num_classes=num_classes, per_class=per_class,
        alpha=alpha, beta=beta))
    assert jnp.allclose(loss3, ref3, rtol=1e-3, atol=1e-3), (loss3, ref3)

    print("KERNEL_OK")
</pallas_src>

<mosaic_0001>
module attributes {stable_mosaic.version = 11 : i64} {
  func.func @_mcloss_kernel_single(%arg0: i32, %arg1: memref<2x4x3x256xf32, #tpu.memory_space<vmem>>, %arg2: memref<1x4x3x1xf32, #tpu.memory_space<vmem>>, %arg3: memref<2x1x8xf32, #tpu.memory_space<vmem>>) attributes {dimension_semantics = [#tpu.dimension_semantics<parallel>], iteration_bounds = array<i64: 2>, scalar_prefetch = 0 : i64, scratch_operands = 0 : i64, tpu.core_type = #tpu.core_type<tc>, window_params = [{transform_indices = @transform_0, window_bounds = array<i64: 2, 4, 3, 256>}, {pipeline_mode = #tpu.pipeline_mode<synchronous>, transform_indices = @transform_1, window_bounds = array<i64: 1, 4, 3, 1>}, {transform_indices = @transform_2, window_bounds = array<i64: 2, 1, 8>}]} {
    %c0 = arith.constant 0 : index
    %c0_0 = arith.constant 0 : index
    %c0_1 = arith.constant 0 : index
    %c0_2 = arith.constant 0 : index
    %0 = vector.load %arg1[%c0, %c0_0, %c0_1, %c0_2] : memref<2x4x3x256xf32, #tpu.memory_space<vmem>>, vector<2x4x3x256xf32>
    %c0_3 = arith.constant 0 : index
    %c0_4 = arith.constant 0 : index
    %c0_5 = arith.constant 0 : index
    %c0_6 = arith.constant 0 : index
    %1 = vector.load %arg2[%c0_3, %c0_4, %c0_5, %c0_6] : memref<1x4x3x1xf32, #tpu.memory_space<vmem>>, vector<1x4x3x1xf32>
    %2 = vector.broadcast %1 : vector<1x4x3x1xf32> to vector<2x4x3x256xf32>
    %3 = arith.mulf %0, %2 : vector<2x4x3x256xf32>
    %cst = arith.constant dense<0xFF800000> : vector<2x4x256xf32>
    %4 = vector.multi_reduction <maximumf>, %3, %cst [2] : vector<2x4x3x256xf32> to vector<2x4x256xf32>
    %cst_7 = arith.constant dense<0.000000e+00> : vector<2x4xf32>
    %5 = vector.multi_reduction <add>, %4, %cst_7 [2] : vector<2x4x256xf32> to vector<2x4xf32>
    %cst_8 = arith.constant 3.906250e-03 : f32
    %6 = vector.broadcast %cst_8 : f32 to vector<2x4xf32>
    %7 = arith.mulf %5, %6 : vector<2x4xf32>
    %cst_9 = arith.constant dense<0xFF800000> : vector<2x4x3xf32>
    %8 = vector.multi_reduction <maximumf>, %0, %cst_9 [3] : vector<2x4x3x256xf32> to vector<2x4x3xf32>
    %9 = vector.shape_cast %8 : vector<2x4x3xf32> to vector<2x4x3x1xf32>
    %10 = vector.broadcast %9 : vector<2x4x3x1xf32> to vector<2x4x3x256xf32>
    %11 = arith.subf %0, %10 : vector<2x4x3x256xf32>
    %12 = math.exp %11 : vector<2x4x3x256xf32>
    %cst_10 = arith.constant dense<0.000000e+00> : vector<2x4x3xf32>
    %13 = vector.multi_reduction <add>, %12, %cst_10 [3] : vector<2x4x3x256xf32> to vector<2x4x3xf32>
    %14 = vector.shape_cast %13 : vector<2x4x3xf32> to vector<2x4x3x1xf32>
    %15 = math.log %14 : vector<2x4x3x1xf32>
    %16 = arith.addf %9, %15 : vector<2x4x3x1xf32>
    %17 = vector.broadcast %16 : vector<2x4x3x1xf32> to vector<2x4x3x256xf32>
    %18 = arith.subf %0, %17 : vector<2x4x3x256xf32>
    %cst_11 = arith.constant dense<0xFF800000> : vector<2x4x256xf32>
    %19 = vector.multi_reduction <maximumf>, %18, %cst_11 [2] : vector<2x4x3x256xf32> to vector<2x4x256xf32>
    %20 = math.exp %19 : vector<2x4x256xf32>
    %cst_12 = arith.constant dense<0.000000e+00> : vector<2x4xf32>
    %21 = vector.multi_reduction <add>, %20, %cst_12 [2] : vector<2x4x256xf32> to vector<2x4xf32>
    %22 = tpu.concatenate %7, %21 in 1 : vector<2x4xf32>, vector<2x4xf32> -> vector<2x8xf32>
    %23 = vector.shape_cast %22 : vector<2x8xf32> to vector<2x1x8xf32>
    %c0_13 = arith.constant 0 : index
    %c0_14 = arith.constant 0 : index
    %c0_15 = arith.constant 0 : index
    %24 = vector.load %arg3[%c0_13, %c0_14, %c0_15] : memref<2x1x8xf32, #tpu.memory_space<vmem>>, vector<2x1x8xf32>
    tpu.vector_store %arg3[%c0_13, %c0_14, %c0_15], %23 {strides = array<i32>} : memref<2x1x8xf32, #tpu.memory_space<vmem>>, vector<2x1x8xf32>,
    return
  }
  func.func @transform_0(%arg0: i32) -> (i32, i32, i32, i32) {
    %c0_i32 = arith.constant 0 : i32
    %c0_i32_0 = arith.constant 0 : i32
    %c0_i32_1 = arith.constant 0 : i32
    %c0_i32_2 = arith.constant 0 : i32
    return %arg0, %c0_i32, %c0_i32_0, %c0_i32_1 : i32, i32, i32, i32
  }
  func.func @transform_1(%arg0: i32) -> (i32, i32, i32, i32) {
    %c0_i32 = arith.constant 0 : i32
    %c0_i32_0 = arith.constant 0 : i32
    %c0_i32_1 = arith.constant 0 : i32
    %c0_i32_2 = arith.constant 0 : i32
    %c0_i32_3 = arith.constant 0 : i32
    return %c0_i32, %c0_i32_0, %c0_i32_1, %c0_i32_2 : i32, i32, i32, i32
  }
  func.func @transform_2(%arg0: i32) -> (i32, i32, i32) {
    %c0_i32 = arith.constant 0 : i32
    %c0_i32_0 = arith.constant 0 : i32
    %c0_i32_1 = arith.constant 0 : i32
    return %arg0, %c0_i32, %c0_i32_0 : i32, i32, i32
  }
}

</mosaic_0001>

<llo_original>
// kernel: tpu_custom_call.1
$region0: #{tpu_custom_call.1}
  #allocation0 [shape = 'u32[]', space=smem, size = 0x4, offset = 0x4, fixed_abs, tag = 'smem constant byte address 0x4 - core index']
  #allocation1 [shape = 'u32[144,128]{1,0:T(1,128)}', space=vmem, size = 0x12000, scoped, tag = 'internal scratch']
  %s0 = inlined_call_operand.vmem [shape: f32[4,4,3,256], index: 0, kind: input, shape index: {}]
  %s1 = inlined_call_operand.vmem [shape: f32[1,4,3,1], index: 1, kind: input, shape index: {}]
  %s2 = inlined_call_operand.hbm [shape: f32[4,1,8], index: 2, kind: output, shape index: {}]
  %s3 = sld [smem:[#allocation0]]
  $region41: #{tpu_custom_call.1} parent=0
    _
  %s5 = ssub.s32 1, %s3
  %s6 = scalar_select 0, %s5, %s3
  $region1: #{tpu_custom_call.1} parent=0
    #allocation2 [shape = 'u8[2048]{0}', space=vmem, size = 0x800, scoped, tag = 'output window, operand 0']
    #allocation3 [shape = 's32[2]{0}', space=sflag, size = 0x8, scoped, tag = 'scoped memory for tpu_custom_call.1']
    %7 = vsyncpa [#allocation3], 0
    %s8 = scalar_lea.sflag [#allocation3], 1
    %9 = vsyncpa %s8, 0
    loop: start=0, step=1, limit=4
    $region2: #{tpu_custom_call.1} parent=1 // loop_pre_header
      _
    $region3: #{tpu_custom_call.1} parent=1 // loop_header
      %s11 = sphi 0, %s15
      %p12 = scmp.ge.s32.totalorder %s11, 4
      %s21 = sphi 0, %s23
      %s24 = sphi 0, %s21
      %s25 = sphi 0, %s24
      %s41 = sphi 0, %s25
      %s45 = sphi 0, %s45
      %s47 = sphi 0, %s45
      %s48 = sphi 0, %s47
      %s62 = sphi 0, %s48
      %s68 = sphi 0, %s70
      %s71 = sphi 0, %s68
      %s72 = sphi 0, %s71
      %s88 = sphi 0, %s72
    $region4: #{tpu_custom_call.1} parent=1 // loop_header_branch
      %14 = sbr.rel (%p12) target = $region8
    $region5: #{tpu_custom_call.1} parent=1 // loop_body
      %s16 = ssub.s32 %s11, 1
      %s17 = ssub.s32 %s11, 2
      %s18 = sadd.s32 %s11, 1
      %s19 = ssub.s32 %s11, %s18
      %p20 = scmp.eq.s32.totalorder %s19, 0
      %s22 = sadd.s32 %s21, 1
      %s23 = scalar_select %p20, %s21, %s22
      %p26 = pneg %p20
      %p27 = scmp.eq.s32.totalorder %s11, 1
      %p28 = por %p26, %p27
      %p29 = scmp.ne.s32.totalorder %s21, %s24
      %p30 = scmp.eq.s32.totalorder %s11, 0
      %p31 = por %p29, %p30
      %p32 = scmp.ne.s32.totalorder %s21, %s24
      %p33 = scmp.eq.s32.totalorder %s16, 1
      %p34 = por %p32, %p33
      %p35 = scmp.ne.s32.totalorder %s24, %s25
      %p36 = scmp.eq.s32.totalorder %s16, 0
      %p37 = por %p35, %p36
      %p38 = scmp.ne.s32.totalorder %s24, %s25
      %p39 = scmp.eq.s32.totalorder %s17, 1
      %p40 = por %p38, %p39
      %p42 = scmp.ne.s32.totalorder %s25, %s41
      %p43 = scmp.eq.s32.totalorder %s17, 0
      %p44 = por %p42, %p43
      %s46 = sadd.s32 %s45, 1
      %p49 = scmp.eq.s32.totalorder %s11, 1
      %p50 = scmp.ne.s32.totalorder %s45, %s47
      %p51 = scmp.eq.s32.totalorder %s11, 0
      %p52 = por %p50, %p51
      %p53 = scmp.ne.s32.totalorder %s45, %s47
      %p54 = scmp.eq.s32.totalorder %s16, 1
      %p55 = por %p53, %p54
      %p56 = scmp.ne.s32.totalorder %s47, %s48
      %p57 = scmp.eq.s32.totalorder %s16, 0
      %p58 = por %p56, %p57
      %p59 = scmp.ne.s32.totalorder %s47, %s48
      %p60 = scmp.eq.s32.totalorder %s17, 1
      %p61 = por %p59, %p60
      %p63 = scmp.ne.s32.totalorder %s48, %s62
      %p64 = scmp.eq.s32.totalorder %s17, 0
      %p65 = por %p63, %p64
      %s66 = ssub.s32 %s11, %s18
      %p67 = scmp.eq.s32.totalorder %s66, 0
      %s69 = sadd.s32 %s68, 1
      %s70 = scalar_select %p67, %s68, %s69
      %p73 = pneg %p67
      %p74 = scmp.eq.s32.totalorder %s11, 1
      %p75 = por %p73, %p74
      %p76 = scmp.ne.s32.totalorder %s68, %s71
      %p77 = scmp.eq.s32.totalorder %s11, 0
      %p78 = por %p76, %p77
      %p79 = scmp.ne.s32.totalorder %s68, %s71
      %p80 = scmp.eq.s32.totalorder %s16, 1
      %p81 = por %p79, %p80
      %p82 = scmp.ne.s32.totalorder %s71, %s72
      %p83 = scmp.eq.s32.totalorder %s16, 0
      %p84 = por %p82, %p83
      %p85 = scmp.ne.s32.totalorder %s71, %s72
      %p86 = scmp.eq.s32.totalorder %s17, 1
      %p87 = por %p85, %p86
      %p89 = scmp.ne.s32.totalorder %s72, %s88
      %p90 = scmp.eq.s32.totalorder %s17, 0
      %p91 = por %p89, %p90
      %p92 = scmp.le.s32.totalorder 1, %s11
      %p93 = scmp.lt.s32.totalorder %s11, 3
      %p94 = pnand %p92, %p93
      %p95 = pneg %p94
      // Predicated region
      $region9: #{tpu_custom_call.1} parent=5 // pred_check
        _
      $region10: #{tpu_custom_call.1} parent=5 // pred_check_branch
        %97 = sbr.rel (%p94) target = $region12
      $region11: #{tpu_custom_call.1} parent=5 // pred_region
        %s98 = ssub.s32 %s11, 1
        // Predicated region
        $region13: #{tpu_custom_call.1} parent=11 // pred_check
          %p99 = pneg %p58
        $region14: #{tpu_custom_call.1} parent=11 // pred_check_branch
          %101 = sbr.rel (%p99) target = $region16
        $region15: #{tpu_custom_call.1} parent=11 // pred_region
          _
        $region16: #{tpu_custom_call.1} parent=11 // pred_fallthru
          _
      $region12: #{tpu_custom_call.1} parent=5 // pred_fallthru
        _
      %p102 = scmp.lt.s32.totalorder %s11, 2
      // Predicated region
      $region17: #{tpu_custom_call.1} parent=5 // pred_check
        %p103 = pneg %p102
      $region18: #{tpu_custom_call.1} parent=5 // pred_check_branch
        %105 = sbr.rel (%p103) target = $region20
      $region19: #{tpu_custom_call.1} parent=5 // pred_region
        // Predicated region
        $region21: #{tpu_custom_call.1} parent=19 // pred_check
          %p106 = pneg %p31
        $region22: #{tpu_custom_call.1} parent=19 // pred_check_branch
          %108 = sbr.rel (%p106) target = $region24
        $region23: #{tpu_custom_call.1} parent=19 // pred_region
          %s109 = smul.u32 2, %s11
          %p110 = scmp.lt.s32.totalorder %s109, 3
          %s111 = scalar_select %p110, %s109, 3
          %s112 = smul.addr %s111, 8
          %s113 = smul.addr %s112, 4
          %s114 = scalar_lea.vmem %s0, %s113
          %s115 = smul.u32 2, %s11
        $region24: #{tpu_custom_call.1} parent=19 // pred_fallthru
          _
      $region20: #{tpu_custom_call.1} parent=5 // pred_fallthru
        _
      %p116 = scmp.le.s32.totalorder 1, %s11
      %p117 = scmp.lt.s32.totalorder %s11, 3
      %p118 = pnand %p116, %p117
      %p119 = pneg %p118
      // Predicated region
      $region25: #{tpu_custom_call.1} parent=5 // pred_check
        _
      $region26: #{tpu_custom_call.1} parent=5 // pred_check_branch
        %121 = sbr.rel (%p118) target = $region28
      $region27: #{tpu_custom_call.1} parent=5 // pred_region
        %s122 = ssub.s32 %s11, 1
        %s123 = smul.u32 2, %s16
        %p124 = scmp.lt.s32.totalorder %s123, 3
        %s125 = scalar_select %p124, %s123, 3
        %s126 = smul.addr %s125, 8
        %s127 = smul.addr %s126, 4
        %s128 = scalar_lea.vmem %s0, %s127
        %p129 = pneg %p37
        %p130 = pneg %p34
        %p131 = pneg %p58
        %p132 = pneg %p55
        %p133 = pneg %p84
        %p134 = pneg %p81
        %s135 = sand.u32 %s71, 1
        %s136 = scalar_lea.sflag [#allocation3], %s135
        %s137 = sand.u32 %s71, 1
        %s138 = smul.addr %s137, 2
        %s139 = scalar_lea.vmem [#allocation2], %s138
        %s140 = smul.u32 2, %s16
        %p141 = scmp.lt.s32.totalorder %s140, 3
        %s142 = scalar_select %p141, %s140, 3
        %s143 = smul.addr %s142, 8
        %s144 = smul.addr %s143, 4
        %s145 = scalar_lea.vmem %s0, %s144
        %s146 = smul.u32 2, %s16
        %s147 = smul.u32 2, %s16
        %v148 = vld [vmem:[%s145] sm:$0x77]
        %v149 = vld [vmem:[%s145 + $0x8] sm:$0x77]
        %v150 = vld [vmem:[%s145 + $0x10] sm:$0x77]
        %v151 = vld [vmem:[%s145 + $0x18] sm:$0x77]
        %v152 = vld [vmem:[%s145 + $0x20] sm:$0x77]
        %v153 = vld [vmem:[%s145 + $0x28] sm:$0x77]
        %v154 = vld [vmem:[%s145 + $0x30] sm:$0x77]
        %v155 = vld [vmem:[%s145 + $0x38] sm:$0x77]
        %v156 = vld [vmem:[%s1] sm:$0x7]
        %v157 = vld [vmem:[%s1 + $0x4] sm:$0x7]
        %v158 = vld [vmem:[%s1 + $0x8] sm:$0x7]
        %v159 = vld [vmem:[%s1 + $0xc] sm:$0x7]
        %161 = vset.pattern.permute.xlu0 0
        %162 = vperm.xlu0 %161, %v156
        %v163 = vpop.permute.xlu0 %162
        %165 = vset.pattern.permute.xlu0 0
        %166 = vperm.xlu0 %165, %v157
        %v167 = vpop.permute.xlu0 %166
        %169 = vset.pattern.permute.xlu0 0
        %170 = vperm.xlu0 %169, %v158
        %v171 = vpop.permute.xlu0 %170
        %173 = vset.pattern.permute.xlu0 0
        %174 = vperm.xlu0 %173, %v159
        %v175 = vpop.permute.xlu0 %174
        %v177 = vunpack.c.l.s4 839922192
        %v178 = vunpack.c.0.s8 %v177
        %v179 = vlaneseq
        %v180 = vshrl.u32 %v179, 7
        %v181 = vsub.s32 %v178, %v180
        %v182 = vrot.slane %v163, %v181
        %v184 = vunpack.c.l.s4 839922192
        %v185 = vunpack.c.0.s8 %v184
        %v186 = vlaneseq
        %v187 = vshrl.u32 %v186, 7
        %v188 = vsub.s32 %v185, %v187
        %v189 = vrot.slane %v167, %v188
        %v191 = vunpack.c.l.s4 839922192
        %v192 = vunpack.c.0.s8 %v191
        %v193 = vlaneseq
        %v194 = vshrl.u32 %v193, 7
        %v195 = vsub.s32 %v192, %v194
        %v196 = vrot.slane %v171, %v195
        %v198 = vunpack.c.l.s4 839922192
        %v199 = vunpack.c.0.s8 %v198
        %v200 = vlaneseq
        %v201 = vshrl.u32 %v200, 7
        %v202 = vsub.s32 %v199, %v201
        %v203 = vrot.slane %v175, %v202
        %v208 = vmul.f32 %v148, %v182
        %v209 = vmul.f32 %v149, %v189
        %v210 = vmul.f32 %v150, %v196
        %v211 = vmul.f32 %v151, %v203
        %v212 = vmul.f32 %v152, %v182
        %v213 = vmul.f32 %v153, %v189
        %v214 = vmul.f32 %v154, %v196
        %v215 = vmul.f32 %v155, %v203
        %v224 = vcombine.high %v208, %v208
        %v225 = vcombine.high %v209, %v209
        %v226 = vcombine.high %v210, %v210
        %v227 = vcombine.high %v211, %v211
        %v228 = vcombine.high %v212, %v212
        %v229 = vcombine.high %v213, %v213
        %v230 = vcombine.high %v214, %v214
        %v231 = vcombine.high %v215, %v215
        %vm240 = vcmask 1042432
        %v241 = vsel %vm240, %v208, -inf
        %v242 = vrot.slane %v241, 4
        %v243 = vmax.f32 %v241, %v242
        %v244 = vrot.slane %v243, 2
        %v245 = vmax.f32 %v243, %v244
        %v246 = vrot.slane %v245, 1
        %v247 = vmax.f32 %v245, %v246
        %v248 = vsel %vm240, %v224, -inf
        %v249 = vrot.slane %v248, 4
        %v250 = vmax.f32 %v248, %v249
        %v251 = vrot.slane %v250, 2
        %v252 = vmax.f32 %v250, %v251
        %v253 = vrot.slane %v252, 1
        %v254 = vmax.f32 %v252, %v253
        %v255 = vsel %vm240, %v209, -inf
        %v256 = vrot.slane %v255, 4
        %v257 = vmax.f32 %v255, %v256
        %v258 = vrot.slane %v257, 2
        %v259 = vmax.f32 %v257, %v258
        %v260 = vrot.slane %v259, 1
        %v261 = vmax.f32 %v259, %v260
        %v262 = vsel %vm240, %v225, -inf
        %v263 = vrot.slane %v262, 4
        %v264 = vmax.f32 %v262, %v263
        %v265 = vrot.slane %v264, 2
        %v266 = vmax.f32 %v264, %v265
        %v267 = vrot.slane %v266, 1
        %v268 = vmax.f32 %v266, %v267
        %v269 = vsel %vm240, %v210, -inf
        %v270 = vrot.slane %v269, 4
        %v271 = vmax.f32 %v269, %v270
        %v272 = vrot.slane %v271, 2
        %v273 = vmax.f32 %v271, %v272
        %v274 = vrot.slane %v273, 1
        %v275 = vmax.f32 %v273, %v274
        %v276 = vsel %vm240, %v226, -inf
        %v277 = vrot.slane %v276, 4
        %v278 = vmax.f32 %v276, %v277
        %v279 = vrot.slane %v278, 2
        %v280 = vmax.f32 %v278, %v279
        %v281 = vrot.slane %v280, 1
        %v282 = vmax.f32 %v280, %v281
        %v283 = vsel %vm240, %v211, -inf
        %v284 = vrot.slane %v283, 4
        %v285 = vmax.f32 %v283, %v284
        %v286 = vrot.slane %v285, 2
        %v287 = vmax.f32 %v285, %v286
        %v288 = vrot.slane %v287, 1
        %v289 = vmax.f32 %v287, %v288
        %v290 = vsel %vm240, %v227, -inf
        %v291 = vrot.slane %v290, 4
        %v292 = vmax.f32 %v290, %v291
        %v293 = vrot.slane %v292, 2
        %v294 = vmax.f32 %v292, %v293
        %v295 = vrot.slane %v294, 1
        %v296 = vmax.f32 %v294, %v295
        %v297 = vsel %vm240, %v212, -inf
        %v298 = vrot.slane %v297, 4
        %v299 = vmax.f32 %v297, %v298
        %v300 = vrot.slane %v299, 2
        %v301 = vmax.f32 %v299, %v300
        %v302 = vrot.slane %v301, 1
        %v303 = vmax.f32 %v301, %v302
        %v304 = vsel %vm240, %v228, -inf
        %v305 = vrot.slane %v304, 4
        %v306 = vmax.f32 %v304, %v305
        %v307 = vrot.slane %v306, 2
        %v308 = vmax.f32 %v306, %v307
        %v309 = vrot.slane %v308, 1
        %v310 = vmax.f32 %v308, %v309
        %v311 = vsel %vm240, %v213, -inf
        %v312 = vrot.slane %v311, 4
        %v313 = vmax.f32 %v311, %v312
        %v314 = vrot.slane %v313, 2
        %v315 = vmax.f32 %v313, %v314
        %v316 = vrot.slane %v315, 1
        %v317 = vmax.f32 %v315, %v316
        %v318 = vsel %vm240, %v229, -inf
        %v319 = vrot.slane %v318, 4
        %v320 = vmax.f32 %v318, %v319
        %v321 = vrot.slane %v320, 2
        %v322 = vmax.f32 %v320, %v321
        %v323 = vrot.slane %v322, 1
        %v324 = vmax.f32 %v322, %v323
        %v325 = vsel %vm240, %v214, -inf
        %v326 = vrot.slane %v325, 4
        %v327 = vmax.f32 %v325, %v326
        %v328 = vrot.slane %v327, 2
        %v329 = vmax.f32 %v327, %v328
        %v330 = vrot.slane %v329, 1
        %v331 = vmax.f32 %v329, %v330
        %v332 = vsel %vm240, %v230, -inf
        %v333 = vrot.slane %v332, 4
        %v334 = vmax.f32 %v332, %v333
        %v335 = vrot.slane %v334, 2
        %v336 = vmax.f32 %v334, %v335
        %v337 = vrot.slane %v336, 1
        %v338 = vmax.f32 %v336, %v337
        %v339 = vsel %vm240, %v215, -inf
        %v340 = vrot.slane %v339, 4
        %v341 = vmax.f32 %v339, %v340
        %v342 = vrot.slane %v341, 2
        %v343 = vmax.f32 %v341, %v342
        %v344 = vrot.slane %v343, 1
        %v345 = vmax.f32 %v343, %v344
        %v346 = vsel %vm240, %v231, -inf
        %v347 = vrot.slane %v346, 4
        %v348 = vmax.f32 %v346, %v347
        %v349 = vrot.slane %v348, 2
        %v350 = vmax.f32 %v348, %v349
        %v351 = vrot.slane %v350, 1
        %v352 = vmax.f32 %v350, %v351
        %vm369 = vcmask 1041409
        %v370 = vsel %vm369, %v261, %v247
        %vm371 = vcmask 1042434
        %v372 = vsel %vm371, %v275, %v370
        %vm373 = vcmask 1043459
        %v374 = vsel %vm373, %v289, %v372
        %v375 = vsel %vm369, %v268, %v254
        %v376 = vsel %vm371, %v282, %v375
        %v377 = vsel %vm373, %v296, %v376
        %v378 = vsel %vm369, %v317, %v303
        %v379 = vsel %vm371, %v331, %v378
        %v380 = vsel %vm373, %v345, %v379
        %v381 = vsel %vm369, %v324, %v310
        %v382 = vsel %vm371, %v338, %v381
        %v383 = vsel %vm373, %v352, %v382
        %vm388 = vcmask 1043456
        %v389 = vsel %vm388, %v374, 0.0
        %v390 = vsel %vm388, %v377, 0.0
        %v391 = vadd.f32 %v389, %v390
        %392 = vadd.xlane.f32.xlu0 %v391
        %v393 = vpop.xlane.xlu0 %392
        %v394 = vsel %vm388, %v380, 0.0
        %v395 = vsel %vm388, %v383, 0.0
        %v396 = vadd.f32 %v394, %v395
        %397 = vadd.xlane.f32.xlu0 %v396
        %v398 = vpop.xlane.xlu0 %397
        %v399 = vmul.f32 %v393, 0.00390625
        %v400 = vmul.f32 %v398, 0.00390625
        %v409 = vcombine.high %v148, %v148
        %v410 = vcombine.high %v149, %v149
        %v411 = vcombine.high %v150, %v150
        %v412 = vcombine.high %v151, %v151
        %v413 = vcombine.high %v152, %v152
        %v414 = vcombine.high %v153, %v153
        %v415 = vcombine.high %v154, %v154
        %v416 = vcombine.high %v155, %v155
        %v425 = vsel %vm240, %v148, -inf
        %v426 = vsel %vm240, %v409, -inf
        %v427 = vmax.f32 %v425, %v426
        %428 = vmax.xlane.f32.xlu0 %v427
        %v429 = vpop.xlane.xlu0 %428
        %v430 = vsel %vm240, %v149, -inf
        %v431 = vsel %vm240, %v410, -inf
        %v432 = vmax.f32 %v430, %v431
        %433 = vmax.xlane.f32.xlu0 %v432
        %v434 = vpop.xlane.xlu0 %433
        %v435 = vsel %vm240, %v150, -inf
        %v436 = vsel %vm240, %v411, -inf
        %v437 = vmax.f32 %v435, %v436
        %438 = vmax.xlane.f32.xlu0 %v437
        %v439 = vpop.xlane.xlu0 %438
        %v440 = vsel %vm240, %v151, -inf
        %v441 = vsel %vm240, %v412, -inf
        %v442 = vmax.f32 %v440, %v441
        %443 = vmax.xlane.f32.xlu0 %v442
        %v444 = vpop.xlane.xlu0 %443
        %v445 = vsel %vm240, %v152, -inf
        %v446 = vsel %vm240, %v413, -inf
        %v447 = vmax.f32 %v445, %v446
        %448 = vmax.xlane.f32.xlu0 %v447
        %v449 = vpop.xlane.xlu0 %448
        %v450 = vsel %vm240, %v153, -inf
        %v451 = vsel %vm240, %v414, -inf
        %v452 = vmax.f32 %v450, %v451
        %453 = vmax.xlane.f32.xlu0 %v452
        %v454 = vpop.xlane.xlu0 %453
        %v455 = vsel %vm240, %v154, -inf
        %v456 = vsel %vm240, %v415, -inf
        %v457 = vmax.f32 %v455, %v456
        %458 = vmax.xlane.f32.xlu0 %v457
        %v459 = vpop.xlane.xlu0 %458
        %v460 = vsel %vm240, %v155, -inf
        %v461 = vsel %vm240, %v416, -inf
        %v462 = vmax.f32 %v460, %v461
        %463 = vmax.xlane.f32.xlu0 %v462
        %v464 = vpop.xlane.xlu0 %463
        %v474 = vunpack.c.l.s4 839922192
        %v475 = vunpack.c.0.s8 %v474
        %v476 = vlaneseq
        %v477 = vshrl.u32 %v476, 7
        %v478 = vsub.s32 %v475, %v477
        %v479 = vrot.slane %v429, %v478
        %v481 = vunpack.c.l.s4 839922192
        %v482 = vunpack.c.0.s8 %v481
        %v483 = vlaneseq
        %v484 = vshrl.u32 %v483, 7
        %v485 = vsub.s32 %v482, %v484
        %v486 = vrot.slane %v434, %v485
        %v488 = vunpack.c.l.s4 839922192
        %v489 = vunpack.c.0.s8 %v488
        %v490 = vlaneseq
        %v491 = vshrl.u32 %v490, 7
        %v492 = vsub.s32 %v489, %v491
        %v493 = vrot.slane %v439, %v492
        %v495 = vunpack.c.l.s4 839922192
        %v496 = vunpack.c.0.s8 %v495
        %v497 = vlaneseq
        %v498 = vshrl.u32 %v497, 7
        %v499 = vsub.s32 %v496, %v498
        %v500 = vrot.slane %v444, %v499
        %v502 = vunpack.c.l.s4 839922192
        %v503 = vunpack.c.0.s8 %v502
        %v504 = vlaneseq
        %v505 = vshrl.u32 %v504, 7
        %v506 = vsub.s32 %v503, %v505
        %v507 = vrot.slane %v449, %v506
        %v509 = vunpack.c.l.s4 839922192
        %v510 = vunpack.c.0.s8 %v509
        %v511 = vlaneseq
        %v512 = vshrl.u32 %v511, 7
        %v513 = vsub.s32 %v510, %v512
        %v514 = vrot.slane %v454, %v513
        %v516 = vunpack.c.l.s4 839922192
        %v517 = vunpack.c.0.s8 %v516
        %v518 = vlaneseq
        %v519 = vshrl.u32 %v518, 7
        %v520 = vsub.s32 %v517, %v519
        %v521 = vrot.slane %v459, %v520
        %v523 = vunpack.c.l.s4 839922192
        %v524 = vunpack.c.0.s8 %v523
        %v525 = vlaneseq
        %v526 = vshrl.u32 %v525, 7
        %v527 = vsub.s32 %v524, %v526
        %v528 = vrot.slane %v464, %v527
        %v537 = vsub.f32 %v148, %v479
        %v538 = vsub.f32 %v149, %v486
        %v539 = vsub.f32 %v150, %v493
        %v540 = vsub.f32 %v151, %v500
        %v541 = vsub.f32 %v152, %v507
        %v542 = vsub.f32 %v153, %v514
        %v543 = vsub.f32 %v154, %v521
        %v544 = vsub.f32 %v155, %v528
        %v545 = vmul.f32 %v537, 1.442695
        %v546 = vpow.pop %v545
        %v547 = vmul.f32 %v538, 1.442695
        %v548 = vpow.pop %v547
        %v549 = vmul.f32 %v539, 1.442695
        %v550 = vpow.pop %v549
        %v551 = vmul.f32 %v540, 1.442695
        %v552 = vpow.pop %v551
        %v553 = vmul.f32 %v541, 1.442695
        %v554 = vpow.pop %v553
        %v555 = vmul.f32 %v542, 1.442695
        %v556 = vpow.pop %v555
        %v557 = vmul.f32 %v543, 1.442695
        %v558 = vpow.pop %v557
        %v559 = vmul.f32 %v544, 1.442695
        %v560 = vpow.pop %v559
        %v569 = vcombine.high %v546, %v546
        %v570 = vcombine.high %v548, %v548
        %v571 = vcombine.high %v550, %v550
        %v572 = vcombine.high %v552, %v552
        %v573 = vcombine.high %v554, %v554
        %v574 = vcombine.high %v556, %v556
        %v575 = vcombine.high %v558, %v558
        %v576 = vcombine.high %v560, %v560
        %v585 = vsel %vm240, %v546, 0.0
        %v586 = vsel %vm240, %v569, 0.0
        %v587 = vadd.f32 %v585, %v586
        %588 = vadd.xlane.f32.xlu0 %v587
        %v589 = vpop.xlane.xlu0 %588
        %v590 = vsel %vm240, %v548, 0.0
        %v591 = vsel %vm240, %v570, 0.0
        %v592 = vadd.f32 %v590, %v591
        %593 = vadd.xlane.f32.xlu0 %v592
        %v594 = vpop.xlane.xlu0 %593
        %v595 = vsel %vm240, %v550, 0.0
        %v596 = vsel %vm240, %v571, 0.0
        %v597 = vadd.f32 %v595, %v596
        %598 = vadd.xlane.f32.xlu0 %v597
        %v599 = vpop.xlane.xlu0 %598
        %v600 = vsel %vm240, %v552, 0.0
        %v601 = vsel %vm240, %v572, 0.0
        %v602 = vadd.f32 %v600, %v601
        %603 = vadd.xlane.f32.xlu0 %v602
        %v604 = vpop.xlane.xlu0 %603
        %v605 = vsel %vm240, %v554, 0.0
        %v606 = vsel %vm240, %v573, 0.0
        %v607 = vadd.f32 %v605, %v606
        %608 = vadd.xlane.f32.xlu0 %v607
        %v609 = vpop.xlane.xlu0 %608
        %v610 = vsel %vm240, %v556, 0.0
        %v611 = vsel %vm240, %v574, 0.0
        %v612 = vadd.f32 %v610, %v611
        %613 = vadd.xlane.f32.xlu0 %v612
        %v614 = vpop.xlane.xlu0 %613
        %v615 = vsel %vm240, %v558, 0.0
        %v616 = vsel %vm240, %v575, 0.0
        %v617 = vadd.f32 %v615, %v616
        %618 = vadd.xlane.f32.xlu0 %v617
        %v619 = vpop.xlane.xlu0 %618
        %v620 = vsel %vm240, %v560, 0.0
        %v621 = vsel %vm240, %v576, 0.0
        %v622 = vadd.f32 %v620, %v621
        %623 = vadd.xlane.f32.xlu0 %v622
        %v624 = vpop.xlane.xlu0 %623
        %v625 = vlog2.pop %v589
        %v626 = vmul.f32 %v625, 0.6931472
        %v627 = vlog2.pop %v594
        %v628 = vmul.f32 %v627, 0.6931472
        %v629 = vlog2.pop %v599
        %v630 = vmul.f32 %v629, 0.6931472
        %v631 = vlog2.pop %v604
        %v632 = vmul.f32 %v631, 0.6931472
        %v633 = vlog2.pop %v609
        %v634 = vmul.f32 %v633, 0.6931472
        %v635 = vlog2.pop %v614
        %v636 = vmul.f32 %v635, 0.6931472
        %v637 = vlog2.pop %v619
        %v638 = vmul.f32 %v637, 0.6931472
        %v639 = vlog2.pop %v624
        %v640 = vmul.f32 %v639, 0.6931472
        %v641 = vadd.f32 %v429, %v626
        %v642 = vadd.f32 %v434, %v628
        %v643 = vadd.f32 %v439, %v630
        %v644 = vadd.f32 %v444, %v632
        %v645 = vadd.f32 %v449, %v634
        %v646 = vadd.f32 %v454, %v636
        %v647 = vadd.f32 %v459, %v638
        %v648 = vadd.f32 %v464, %v640
        %v658 = vunpack.c.l.s4 839922192
        %v659 = vunpack.c.0.s8 %v658
        %v660 = vlaneseq
        %v661 = vshrl.u32 %v660, 7
        %v662 = vsub.s32 %v659, %v661
        %v663 = vrot.slane %v641, %v662
        %v665 = vunpack.c.l.s4 839922192
        %v666 = vunpack.c.0.s8 %v665
        %v667 = vlaneseq
        %v668 = vshrl.u32 %v667, 7
        %v669 = vsub.s32 %v666, %v668
        %v670 = vrot.slane %v642, %v669
        %v672 = vunpack.c.l.s4 839922192
        %v673 = vunpack.c.0.s8 %v672
        %v674 = vlaneseq
        %v675 = vshrl.u32 %v674, 7
        %v676 = vsub.s32 %v673, %v675
        %v677 = vrot.slane %v643, %v676
        %v679 = vunpack.c.l.s4 839922192
        %v680 = vunpack.c.0.s8 %v679
        %v681 = vlaneseq
        %v682 = vshrl.u32 %v681, 7
        %v683 = vsub.s32 %v680, %v682
        %v684 = vrot.slane %v644, %v683
        %v686 = vunpack.c.l.s4 839922192
        %v687 = vunpack.c.0.s8 %v686
        %v688 = vlaneseq
        %v689 = vshrl.u32 %v688, 7
        %v690 = vsub.s32 %v687, %v689
        %v691 = vrot.slane %v645, %v690
        %v693 = vunpack.c.l.s4 839922192
        %v694 = vunpack.c.0.s8 %v693
        %v695 = vlaneseq
        %v696 = vshrl.u32 %v695, 7
        %v697 = vsub.s32 %v694, %v696
        %v698 = vrot.slane %v646, %v697
        %v700 = vunpack.c.l.s4 839922192
        %v701 = vunpack.c.0.s8 %v700
        %v702 = vlaneseq
        %v703 = vshrl.u32 %v702, 7
        %v704 = vsub.s32 %v701, %v703
        %v705 = vrot.slane %v647, %v704
        %v707 = vunpack.c.l.s4 839922192
        %v708 = vunpack.c.0.s8 %v707
        %v709 = vlaneseq
        %v710 = vshrl.u32 %v709, 7
        %v711 = vsub.s32 %v708, %v710
        %v712 = vrot.slane %v648, %v711
        %v721 = vsub.f32 %v148, %v663
        %v722 = vsub.f32 %v149, %v670
        %v723 = vsub.f32 %v150, %v677
        %v724 = vsub.f32 %v151, %v684
        %v725 = vsub.f32 %v152, %v691
        %v726 = vsub.f32 %v153, %v698
        %v727 = vsub.f32 %v154, %v705
        %v728 = vsub.f32 %v155, %v712
        %v737 = vcombine.high %v721, %v721
        %v738 = vcombine.high %v722, %v722
        %v739 = vcombine.high %v723, %v723
        %v740 = vcombine.high %v724, %v724
        %v741 = vcombine.high %v725, %v725
        %v742 = vcombine.high %v726, %v726
        %v743 = vcombine.high %v727, %v727
        %v744 = vcombine.high %v728, %v728
        %v753 = vsel %vm240, %v721, -inf
        %v754 = vrot.slane %v753, 4
        %v755 = vmax.f32 %v753, %v754
        %v756 = vrot.slane %v755, 2
        %v757 = vmax.f32 %v755, %v756
        %v758 = vrot.slane %v757, 1
        %v759 = vmax.f32 %v757, %v758
        %v760 = vsel %vm240, %v737, -inf
        %v761 = vrot.slane %v760, 4
        %v762 = vmax.f32 %v760, %v761
        %v763 = vrot.slane %v762, 2
        %v764 = vmax.f32 %v762, %v763
        %v765 = vrot.slane %v764, 1
        %v766 = vmax.f32 %v764, %v765
        %v767 = vsel %vm240, %v722, -inf
        %v768 = vrot.slane %v767, 4
        %v769 = vmax.f32 %v767, %v768
        %v770 = vrot.slane %v769, 2
        %v771 = vmax.f32 %v769, %v770
        %v772 = vrot.slane %v771, 1
        %v773 = vmax.f32 %v771, %v772
        %v774 = vsel %vm240, %v738, -inf
        %v775 = vrot.slane %v774, 4
        %v776 = vmax.f32 %v774, %v775
        %v777 = vrot.slane %v776, 2
        %v778 = vmax.f32 %v776, %v777
        %v779 = vrot.slane %v778, 1
        %v780 = vmax.f32 %v778, %v779
        %v781 = vsel %vm240, %v723, -inf
        %v782 = vrot.slane %v781, 4
        %v783 = vmax.f32 %v781, %v782
        %v784 = vrot.slane %v783, 2
        %v785 = vmax.f32 %v783, %v784
        %v786 = vrot.slane %v785, 1
        %v787 = vmax.f32 %v785, %v786
        %v788 = vsel %vm240, %v739, -inf
        %v789 = vrot.slane %v788, 4
        %v790 = vmax.f32 %v788, %v789
        %v791 = vrot.slane %v790, 2
        %v792 = vmax.f32 %v790, %v791
        %v793 = vrot.slane %v792, 1
        %v794 = vmax.f32 %v792, %v793
        %v795 = vsel %vm240, %v724, -inf
        %v796 = vrot.slane %v795, 4
        %v797 = vmax.f32 %v795, %v796
        %v798 = vrot.slane %v797, 2
        %v799 = vmax.f32 %v797, %v798
        %v800 = vrot.slane %v799, 1
        %v801 = vmax.f32 %v799, %v800
        %v802 = vsel %vm240, %v740, -inf
        %v803 = vrot.slane %v802, 4
        %v804 = vmax.f32 %v802, %v803
        %v805 = vrot.slane %v804, 2
        %v806 = vmax.f32 %v804, %v805
        %v807 = vrot.slane %v806, 1
        %v808 = vmax.f32 %v806, %v807
        %v809 = vsel %vm240, %v725, -inf
        %v810 = vrot.slane %v809, 4
        %v811 = vmax.f32 %v809, %v810
        %v812 = vrot.slane %v811, 2
        %v813 = vmax.f32 %v811, %v812
        %v814 = vrot.slane %v813, 1
        %v815 = vmax.f32 %v813, %v814
        %v816 = vsel %vm240, %v741, -inf
        %v817 = vrot.slane %v816, 4
        %v818 = vmax.f32 %v816, %v817
        %v819 = vrot.slane %v818, 2
        %v820 = vmax.f32 %v818, %v819
        %v821 = vrot.slane %v820, 1
        %v822 = vmax.f32 %v820, %v821
        %v823 = vsel %vm240, %v726, -inf
        %v824 = vrot.slane %v823, 4
        %v825 = vmax.f32 %v823, %v824
        %v826 = vrot.slane %v825, 2
        %v827 = vmax.f32 %v825, %v826
        %v828 = vrot.slane %v827, 1
        %v829 = vmax.f32 %v827, %v828
        %v830 = vsel %vm240, %v742, -inf
        %v831 = vrot.slane %v830, 4
        %v832 = vmax.f32 %v830, %v831
        %v833 = vrot.slane %v832, 2
        %v834 = vmax.f32 %v832, %v833
        %v835 = vrot.slane %v834, 1
        %v836 = vmax.f32 %v834, %v835
        %v837 = vsel %vm240, %v727, -inf
        %v838 = vrot.slane %v837, 4
        %v839 = vmax.f32 %v837, %v838
        %v840 = vrot.slane %v839, 2
        %v841 = vmax.f32 %v839, %v840
        %v842 = vrot.slane %v841, 1
        %v843 = vmax.f32 %v841, %v842
        %v844 = vsel %vm240, %v743, -inf
        %v845 = vrot.slane %v844, 4
        %v846 = vmax.f32 %v844, %v845
        %v847 = vrot.slane %v846, 2
        %v848 = vmax.f32 %v846, %v847
        %v849 = vrot.slane %v848, 1
        %v850 = vmax.f32 %v848, %v849
        %v851 = vsel %vm240, %v728, -inf
        %v852 = vrot.slane %v851, 4
        %v853 = vmax.f32 %v851, %v852
        %v854 = vrot.slane %v853, 2
        %v855 = vmax.f32 %v853, %v854
        %v856 = vrot.slane %v855, 1
        %v857 = vmax.f32 %v855, %v856
        %v858 = vsel %vm240, %v744, -inf
        %v859 = vrot.slane %v858, 4
        %v860 = vmax.f32 %v858, %v859
        %v861 = vrot.slane %v860, 2
        %v862 = vmax.f32 %v860, %v861
        %v863 = vrot.slane %v862, 1
        %v864 = vmax.f32 %v862, %v863
        %v865 = vmul.f32 %v759, 1.442695
        %v866 = vpow.pop %v865
        %v867 = vmul.f32 %v766, 1.442695
        %v868 = vpow.pop %v867
        %v869 = vmul.f32 %v773, 1.442695
        %v870 = vpow.pop %v869
        %v871 = vmul.f32 %v780, 1.442695
        %v872 = vpow.pop %v871
        %v873 = vmul.f32 %v787, 1.442695
        %v874 = vpow.pop %v873
        %v875 = vmul.f32 %v794, 1.442695
        %v876 = vpow.pop %v875
        %v877 = vmul.f32 %v801, 1.442695
        %v878 = vpow.pop %v877
        %v879 = vmul.f32 %v808, 1.442695
        %v880 = vpow.pop %v879
        %v881 = vmul.f32 %v815, 1.442695
        %v882 = vpow.pop %v881
        %v883 = vmul.f32 %v822, 1.442695
        %v884 = vpow.pop %v883
        %v885 = vmul.f32 %v829, 1.442695
        %v886 = vpow.pop %v885
        %v887 = vmul.f32 %v836, 1.442695
        %v888 = vpow.pop %v887
        %v889 = vmul.f32 %v843, 1.442695
        %v890 = vpow.pop %v889
        %v891 = vmul.f32 %v850, 1.442695
        %v892 = vpow.pop %v891
        %v893 = vmul.f32 %v857, 1.442695
        %v894 = vpow.pop %v893
        %v895 = vmul.f32 %v864, 1.442695
        %v896 = vpow.pop %v895
        %v913 = vsel %vm369, %v870, %v866
        %v914 = vsel %vm371, %v874, %v913
        %v915 = vsel %vm373, %v878, %v914
        %v916 = vsel %vm369, %v872, %v868
        %v917 = vsel %vm371, %v876, %v916
        %v918 = vsel %vm373, %v880, %v917
        %v919 = vsel %vm369, %v886, %v882
        %v920 = vsel %vm371, %v890, %v919
        %v921 = vsel %vm373, %v894, %v920
        %v922 = vsel %vm369, %v888, %v884
        %v923 = vsel %vm371, %v892, %v922
        %v924 = vsel %vm373, %v896, %v923
        %v929 = vsel %vm388, %v915, 0.0
        %v930 = vsel %vm388, %v918, 0.0
        %v931 = vadd.f32 %v929, %v930
        %932 = vadd.xlane.f32.xlu0 %v931
        %v933 = vpop.xlane.xlu0 %932
        %v934 = vsel %vm388, %v921, 0.0
        %v935 = vsel %vm388, %v924, 0.0
        %v936 = vadd.f32 %v934, %v935
        %937 = vadd.xlane.f32.xlu0 %v936
        %v938 = vpop.xlane.xlu0 %937
        %v941 = vlaneseq
        %v942 = vand.u32 %v941, 127
        %v943 = vlaneseq
        %v944 = vshrl.u32 %v943, 7
        %v945 = vsub.s32 %v942, %v944
        %v946 = vrot.slane %v399, %v945
        %v947 = vlaneseq
        %v948 = vshrl.u32 %v947, 7
        %v949 = vsub.s32 %v942, %v948
        %v950 = vrot.slane %v400, %v949
        %v951 = vsel %vm369, %v950, %v946
        %v955 = vadd.s32 %v942, 4294967292
        %v956 = vlaneseq
        %v957 = vshrl.u32 %v956, 7
        %v958 = vsub.s32 %v955, %v957
        %v959 = vrot.slane %v933, %v958
        %v960 = vlaneseq
        %v961 = vshrl.u32 %v960, 7
        %v962 = vsub.s32 %v955, %v961
        %v963 = vrot.slane %v938, %v962
        %v964 = vsel %vm369, %v963, %v959
        %vm966 = vcmask 31744
        %v967 = vsel %vm966, %v951, %v964
        %v970 = vunpack.c.l.s4 1966171168
        %v971 = vunpack.c.0.s8 %v970
        %v972 = vlaneseq
        %v973 = vshrl.u32 %v972, 7
        %v974 = vsub.s32 %v971, %v973
        %v975 = vrot.slane %v967, %v974
        %v976 = vcombine.high %v975, %v975
        %v978 = vunpack.c.l.s4 1966171168
        %v979 = vunpack.c.0.s8 %v978
        %v980 = vlaneseq
        %v981 = vshrl.u32 %v980, 7
        %v982 = vsub.s32 %v979, %v981
        %v983 = vrot.slane %v975, %v982
        %v985 = vunpack.c.l.s4 1966171168
        %v986 = vunpack.c.0.s8 %v985
        %v987 = vlaneseq
        %v988 = vshrl.u32 %v987, 7
        %v989 = vsub.s32 %v986, %v988
        %v990 = vrot.slane %v976, %v989
        %vm993 = vcmask 57344
        %994 = vst.msk [vmem:[%s139] sm:$0x1] %vm993, %v983
        %995 = vst.msk [vmem:[%s139 + $0x1] sm:$0x1] %vm993, %v990
        %s996 = sand.u32 %s71, 1
        %s997 = scalar_lea.sflag [#allocation3], %s996
        %s998 = sand.u32 %s71, 1
        %s999 = smul.addr %s998, 2
        %s1000 = scalar_lea.vmem [#allocation2], %s999
        // Predicated region
        $region29: #{tpu_custom_call.1} parent=27 // pred_check
          %p1001 = pneg %p81
        $region30: #{tpu_custom_call.1} parent=27 // pred_check_branch
          %1003 = sbr.rel (%p1001) target = $region32
        $region31: #{tpu_custom_call.1} parent=27 // pred_region
          %s1004 = smul.u32 2, %s16
          %s1006 = ssub.s32 32, 32
          %1007 = vsyncadd %s997, %s1006
          %s1008 = smul.addr %s1004, 16
          %s1009 = scalar_lea.hbm %s2, %s1008
          %s1010 = sshll.u32 %s1000, 4
          %s1011 = int_to_ptr.vmem [resolvable:$true] %s1010
          %1016 = dma.vmem_to_hbm [thread:$0]  %s1011, 32, %s1009, %s997, 16, 16, 1
        $region32: #{tpu_custom_call.1} parent=27 // pred_fallthru
          _
      $region28: #{tpu_custom_call.1} parent=5 // pred_fallthru
        _
      %p1017 = scmp.le.s32.totalorder 2, %s11
      // Predicated region
      $region33: #{tpu_custom_call.1} parent=5 // pred_check
        %p1018 = pneg %p1017
      $region34: #{tpu_custom_call.1} parent=5 // pred_check_branch
        %1020 = sbr.rel (%p1018) target = $region36
      $region35: #{tpu_custom_call.1} parent=5 // pred_region
        %s1021 = ssub.s32 %s11, 2
        // Predicated region
        $region37: #{tpu_custom_call.1} parent=35 // pred_check
          %p1022 = pneg %p87
        $region38: #{tpu_custom_call.1} parent=35 // pred_check_branch
          %1024 = sbr.rel (%p1022) target = $region40
        $region39: #{tpu_custom_call.1} parent=35 // pred_region
          %s1025 = sand.u32 %s72, 1
          %s1026 = scalar_lea.sflag [#allocation3], %s1025
          %s1027 = sand.u32 %s72, 1
          %s1028 = smul.addr %s1027, 2
          %s1029 = scalar_lea.vmem [#allocation2], %s1028
          %1030 = dma.done %s1026, 32
        $region40: #{tpu_custom_call.1} parent=35 // pred_fallthru
          _
      $region36: #{tpu_custom_call.1} parent=5 // pred_fallthru
        _
    $region6: #{tpu_custom_call.1} parent=1 // loop_footer
      %s15 = sadd.s32 1, %s11
    $region7: #{tpu_custom_call.1} parent=1 // loop_footer_branch
      %10 = sbr.rel target = $region3
    $region8: #{tpu_custom_call.1} parent=1 // loop_exit
      _
    %1031 = vsyncpa [#allocation3], 1
    %s1032 = scalar_lea.sflag [#allocation3], 1
    %1033 = vsyncpa %s1032, 1

</llo_original>
